<compile_context>
chip_gen: v6e
topology: v6e:2x2x1
jax: 0.10.0
libtpu: 0.0.40
codegen_flags: <defaults>
</compile_context>

<pallas_src>
import math
import jax
import jax.numpy as jnp
from jax.experimental import pallas as pl
from jax.experimental.pallas import tpu as pltpu

LANE = 128
OUT_PAD = 8      # fc3 logical output (2) padded to 8 lanes only


def _round_up(x, m):
    return ((x + m - 1) // m) * m


def critic_kernel(x_ref, a_ref, w1_ref, b1_ref, w2h_ref, w2a_ref, b2_ref,
                  w3_ref, b3_ref, out_ref):
    # fc1 + relu  (cast activations to bf16 in-kernel; f32 accumulation on MXU)
    x = x_ref[...].astype(jnp.bfloat16)
    h1 = jnp.dot(x, w1_ref[...], preferred_element_type=jnp.float32) + b1_ref[...]
    h1 = jnp.maximum(h1, 0.0).astype(jnp.bfloat16)

    # fc2 over concat([h1, a], 1)  ==  h1 @ W2h (MXU)  +  a @ W2a (VPU FMAs)
    acc = (jnp.dot(h1, w2h_ref[...], preferred_element_type=jnp.float32)
           + b2_ref[...])
    a = a_ref[...].astype(jnp.float32)          # (TB, A), A tiny (e.g. 4)
    w2a = w2a_ref[...]                          # (A, H2P) f32
    for k in range(a_ref.shape[1]):             # static unroll over actions
        acc = acc + a[:, k:k + 1] * w2a[k:k + 1, :]
    h2 = jnp.maximum(acc, 0.0).astype(jnp.bfloat16)

    # fc3 + sigmoid — small (TB, OUT_PAD) output slab
    logits = jnp.dot(h2, w3_ref[...],
                     preferred_element_type=jnp.float32) + b3_ref[...]
    out_ref[...] = jax.nn.sigmoid(logits)


def critic_forward(x, a, params, *, tb=512):
    """Fused Critic forward. Returns (q_values, variance_values), shape (B, 1) each."""
    B, S = x.shape
    A = a.shape[1]
    H1P = params["w1"].shape[1]
    H2P = params["w2h"].shape[1]
    OUTP = params["w3"].shape[1]

    # Batch tiling: multiple of 8 sublanes; ensure >= 2 grid steps when B >= 16
    # so the "parallel" axis can shard across both v7x TensorCores.
    B8 = _round_up(B, 8)
    if B8 >= 16:
        TB = min(tb, _round_up(B8 // 2, 8))
    else:
        TB = B8
    B_pad = _round_up(B8, TB)
    grid = (B_pad // TB,)

    # Only pad a ragged tail; no materialized cast pass in the wrapper.
    if B_pad != B:
        x_in = jnp.zeros((B_pad, S), x.dtype).at[:B].set(x)
        a_in = jnp.zeros((B_pad, A), a.dtype).at[:B].set(a)
    else:
        x_in, a_in = x, a

    def batch_map(i):
        return (i, 0)

    def resident(i):          # constant block index -> weights stay in VMEM
        return (0, 0)

    flops = 2 * B_pad * (S * H1P + H1P * H2P + A * H2P + H2P * OUTP)
    bytes_accessed = (
        x_in.size * x_in.dtype.itemsize + a_in.size * a_in.dtype.itemsize
        + sum(int(params[k].size) * params[k].dtype.itemsize for k in params)
        + B_pad * OUTP * 4)
    cost = pl.CostEstimate(flops=flops, transcendentals=B_pad * OUTP,
                           bytes_accessed=bytes_accessed)

    out = pl.pallas_call(
        critic_kernel,
        out_shape=jax.ShapeDtypeStruct((B_pad, OUTP), jnp.float32),
        grid_spec=pltpu.PrefetchScalarGridSpec(
            num_scalar_prefetch=0,
            grid=grid,
            in_specs=[
                pl.BlockSpec((TB, S), batch_map),       # x tile (native f32)
                pl.BlockSpec((TB, A), batch_map),       # a tile (native f32)
                pl.BlockSpec((S, H1P), resident),       # w1 (bf16)
                pl.BlockSpec((1, H1P), resident),       # b1 (f32)
                pl.BlockSpec((H1P, H2P), resident),     # w2h (bf16)
                pl.BlockSpec((A, H2P), resident),       # w2a (f32, VPU path)
                pl.BlockSpec((1, H2P), resident),       # b2 (f32)
                pl.BlockSpec((H2P, OUTP), resident),    # w3 (bf16, 2 -> 8 pad)
                pl.BlockSpec((1, OUTP), resident),      # b3 (f32)
            ],
            out_specs=pl.BlockSpec((TB, OUTP), batch_map),
        ),
        compiler_params=pltpu.CompilerParams(
            dimension_semantics=("parallel",)),         # megacore on v7x
        cost_estimate=cost,
    )(x_in, a_in,
      params["w1"], params["b1"],
      params["w2h"], params["w2a"], params["b2"],
      params["w3"], params["b3"])

    q_values = out[:B, 0:1]
    variance_values = out[:B, 1:2]
    return q_values, variance_values


def fanin_uniform(key, shape, fan_in):
    v = 1.0 / math.sqrt(fan_in)
    return jax.random.uniform(key, shape, jnp.float32, minval=-v, maxval=v)


def init_critic_params(key, nb_states, nb_actions, hidden1=400, hidden2=300,
                       init_w=0.003):
    """Init at logical PyTorch sizes, then zero-pad to TPU-friendly shapes.

    Weights stored transposed vs. PyTorch ((in, out) layout). MXU weights in
    bf16, the tiny action weight (VPU path) and biases in f32. Zero padding
    keeps the math exact (ReLU(0)=0; padded fc3 columns are sliced away).
    """
    H1P = _round_up(hidden1, LANE)   # 400 -> 512
    H2P = _round_up(hidden2, LANE)   # 300 -> 384 (do NOT pad to 512)
    OUTP = OUT_PAD                   # 2   -> 8

    ks = jax.random.split(key, 6)
    # fc1: fanin_init weight, default Linear bias init
    w1 = fanin_uniform(ks[0], (nb_states, hidden1), nb_states)
    b1 = fanin_uniform(ks[1], (1, hidden1), nb_states)
    # fc2 over concat([h1, a]) — split weight into h1-part and a-part
    fan2 = hidden1 + nb_actions
    w2 = fanin_uniform(ks[2], (fan2, hidden2), fan2)
    w2h, w2a = w2[:hidden1], w2[hidden1:]
    b2 = fanin_uniform(ks[3], (1, hidden2), fan2)
    # fc3: uniform(-init_w, init_w) weight, default bias init
    w3 = jax.random.uniform(ks[4], (hidden2, 2), jnp.float32,
                            minval=-init_w, maxval=init_w)
    b3 = fanin_uniform(ks[5], (1, 2), hidden2)

    def pad2(m, rows, cols, dtype):
        out = jnp.zeros((rows, cols), dtype)
        return out.at[:m.shape[0], :m.shape[1]].set(m.astype(dtype))

    return {
        "w1":  pad2(w1,  nb_states,  H1P,  jnp.bfloat16),
        "b1":  pad2(b1,  1,          H1P,  jnp.float32),
        "w2h": pad2(w2h, H1P,        H2P,  jnp.bfloat16),
        "w2a": pad2(w2a, nb_actions, H2P,  jnp.float32),
        "b2":  pad2(b2,  1,          H2P,  jnp.float32),
        "w3":  pad2(w3,  H2P,        OUTP, jnp.bfloat16),
        "b3":  pad2(b3,  1,          OUTP, jnp.float32),
    }


def critic_reference(x, a, p):
    """Pure-JAX reference using the same padded params / mixed precision."""
    xb = x.astype(jnp.bfloat16)
    h1 = jnp.maximum(
        jnp.dot(xb, p["w1"], preferred_element_type=jnp.float32) + p["b1"], 0.0
    ).astype(jnp.bfloat16)
    h2 = jnp.maximum(
        jnp.dot(h1, p["w2h"], preferred_element_type=jnp.float32)
        + jnp.dot(a.astype(jnp.float32), p["w2a"])
        + p["b2"], 0.0
    ).astype(jnp.bfloat16)
    o = jax.nn.sigmoid(
        jnp.dot(h2, p["w3"], preferred_element_type=jnp.float32) + p["b3"])
    return o[:, 0:1], o[:, 1:2]


if __name__ == "__main__":
    key = jax.random.PRNGKey(0)
    k_param, k_x, k_a = jax.random.split(key, 3)

    batch, nb_states, nb_actions = 8, 16, 4
    hidden1, hidden2 = 400, 300

    params = init_critic_params(k_param, nb_states, nb_actions, hidden1, hidden2)
    x = jax.random.normal(k_x, (batch, nb_states), jnp.float32)
    a = jax.random.normal(k_a, (batch, nb_actions), jnp.float32)

    q, var = critic_forward(x, a, params)
    jax.block_until_ready((q, var))

    q_ref, var_ref = critic_reference(x, a, params)
    assert q.shape == (batch, 1) and var.shape == (batch, 1)
    assert jnp.allclose(q, q_ref, atol=2e-3, rtol=2e-3)
    assert jnp.allclose(var, var_ref, atol=2e-3, rtol=2e-3)

    print("KERNEL_OK")
</pallas_src>

<mosaic_0001>
module attributes {stable_mosaic.version = 11 : i64} {
  func.func @critic_kernel(%arg0: i32, %arg1: memref<8x16xf32, #tpu.memory_space<vmem>>, %arg2: memref<8x4xf32, #tpu.memory_space<vmem>>, %arg3: memref<16x512xbf16, #tpu.memory_space<vmem>>, %arg4: memref<1x512xf32, #tpu.memory_space<vmem>>, %arg5: memref<512x384xbf16, #tpu.memory_space<vmem>>, %arg6: memref<4x384xf32, #tpu.memory_space<vmem>>, %arg7: memref<1x384xf32, #tpu.memory_space<vmem>>, %arg8: memref<384x8xbf16, #tpu.memory_space<vmem>>, %arg9: memref<1x8xf32, #tpu.memory_space<vmem>>, %arg10: memref<8x8xf32, #tpu.memory_space<vmem>>) attributes {dimension_semantics = [#tpu.dimension_semantics<parallel>], iteration_bounds = array<i64: 1>, scalar_prefetch = 0 : i64, scratch_operands = 0 : i64, tpu.core_type = #tpu.core_type<tc>, window_params = [{transform_indices = @transform_0, window_bounds = array<i64: 8, 16>}, {transform_indices = @transform_1, window_bounds = array<i64: 8, 4>}, {pipeline_mode = #tpu.pipeline_mode<synchronous>, transform_indices = @transform_2, window_bounds = array<i64: 16, 512>}, {pipeline_mode = #tpu.pipeline_mode<synchronous>, transform_indices = @transform_3, window_bounds = array<i64: 1, 512>}, {pipeline_mode = #tpu.pipeline_mode<synchronous>, transform_indices = @transform_4, window_bounds = array<i64: 512, 384>}, {pipeline_mode = #tpu.pipeline_mode<synchronous>, transform_indices = @transform_5, window_bounds = array<i64: 4, 384>}, {pipeline_mode = #tpu.pipeline_mode<synchronous>, transform_indices = @transform_6, window_bounds = array<i64: 1, 384>}, {pipeline_mode = #tpu.pipeline_mode<synchronous>, transform_indices = @transform_7, window_bounds = array<i64: 384, 8>}, {pipeline_mode = #tpu.pipeline_mode<synchronous>, transform_indices = @transform_8, window_bounds = array<i64: 1, 8>}, {transform_indices = @transform_9, window_bounds = array<i64: 8, 8>}]} {
    %c0 = arith.constant 0 : index
    %c0_0 = arith.constant 0 : index
    %0 = vector.load %arg1[%c0, %c0_0] : memref<8x16xf32, #tpu.memory_space<vmem>>, vector<8x16xf32>
    %1 = arith.truncf %0 : vector<8x16xf32> to vector<8x16xbf16>
    %c0_1 = arith.constant 0 : index
    %c0_2 = arith.constant 0 : index
    %2 = vector.load %arg3[%c0_1, %c0_2] : memref<16x512xbf16, #tpu.memory_space<vmem>>, vector<16x512xbf16>
    %cst = arith.constant dense<0.000000e+00> : vector<8x512xf32>
    %3 = tpu.matmul %1, %2, %cst {dimension_numbers = #tpu.dot_dimension_numbers<[1], [0], [0], [1], [0, 0, 1, 1], [], []>} : vector<8x16xbf16>, vector<16x512xbf16>, vector<8x512xf32> -> vector<8x512xf32>
    %c0_3 = arith.constant 0 : index
    %c0_4 = arith.constant 0 : index
    %4 = vector.load %arg4[%c0_3, %c0_4] : memref<1x512xf32, #tpu.memory_space<vmem>>, vector<1x512xf32>
    %5 = vector.broadcast %4 : vector<1x512xf32> to vector<8x512xf32>
    %6 = arith.addf %3, %5 : vector<8x512xf32>
    %cst_5 = arith.constant 0.000000e+00 : f32
    %7 = vector.broadcast %cst_5 : f32 to vector<8x512xf32>
    %8 = arith.maximumf %6, %7 : vector<8x512xf32>
    %9 = arith.truncf %8 : vector<8x512xf32> to vector<8x512xbf16>
    %c0_6 = arith.constant 0 : index
    %c0_7 = arith.constant 0 : index
    %10 = vector.load %arg5[%c0_6, %c0_7] : memref<512x384xbf16, #tpu.memory_space<vmem>>, vector<512x384xbf16>
    %cst_8 = arith.constant dense<0.000000e+00> : vector<8x384xf32>
    %11 = tpu.matmul %9, %10, %cst_8 {dimension_numbers = #tpu.dot_dimension_numbers<[1], [0], [0], [1], [0, 0, 1, 1], [], []>} : vector<8x512xbf16>, vector<512x384xbf16>, vector<8x384xf32> -> vector<8x384xf32>
    %c0_9 = arith.constant 0 : index
    %c0_10 = arith.constant 0 : index
    %12 = vector.load %arg7[%c0_9, %c0_10] : memref<1x384xf32, #tpu.memory_space<vmem>>, vector<1x384xf32>
    %13 = vector.broadcast %12 : vector<1x384xf32> to vector<8x384xf32>
    %14 = arith.addf %11, %13 : vector<8x384xf32>
    %c0_11 = arith.constant 0 : index
    %c0_12 = arith.constant 0 : index
    %15 = vector.load %arg2[%c0_11, %c0_12] : memref<8x4xf32, #tpu.memory_space<vmem>>, vector<8x4xf32>
    %c0_13 = arith.constant 0 : index
    %c0_14 = arith.constant 0 : index
    %16 = vector.load %arg6[%c0_13, %c0_14] : memref<4x384xf32, #tpu.memory_space<vmem>>, vector<4x384xf32>
    %17 = vector.extract_strided_slice %15 {offsets = [0, 0], sizes = [8, 1], strides = [1, 1]} : vector<8x4xf32> to vector<8x1xf32>
    %18 = vector.extract_strided_slice %16 {offsets = [0, 0], sizes = [1, 384], strides = [1, 1]} : vector<4x384xf32> to vector<1x384xf32>
    %19 = vector.broadcast %17 : vector<8x1xf32> to vector<8x384xf32>
    %20 = vector.broadcast %18 : vector<1x384xf32> to vector<8x384xf32>
    %21 = arith.mulf %19, %20 : vector<8x384xf32>
    %22 = arith.addf %14, %21 : vector<8x384xf32>
    %23 = vector.extract_strided_slice %15 {offsets = [0, 1], sizes = [8, 1], strides = [1, 1]} : vector<8x4xf32> to vector<8x1xf32>
    %24 = vector.extract_strided_slice %16 {offsets = [1, 0], sizes = [1, 384], strides = [1, 1]} : vector<4x384xf32> to vector<1x384xf32>
    %25 = vector.broadcast %23 : vector<8x1xf32> to vector<8x384xf32>
    %26 = vector.broadcast %24 : vector<1x384xf32> to vector<8x384xf32>
    %27 = arith.mulf %25, %26 : vector<8x384xf32>
    %28 = arith.addf %22, %27 : vector<8x384xf32>
    %29 = vector.extract_strided_slice %15 {offsets = [0, 2], sizes = [8, 1], strides = [1, 1]} : vector<8x4xf32> to vector<8x1xf32>
    %30 = vector.extract_strided_slice %16 {offsets = [2, 0], sizes = [1, 384], strides = [1, 1]} : vector<4x384xf32> to vector<1x384xf32>
    %31 = vector.broadcast %29 : vector<8x1xf32> to vector<8x384xf32>
    %32 = vector.broadcast %30 : vector<1x384xf32> to vector<8x384xf32>
    %33 = arith.mulf %31, %32 : vector<8x384xf32>
    %34 = arith.addf %28, %33 : vector<8x384xf32>
    %35 = vector.extract_strided_slice %15 {offsets = [0, 3], sizes = [8, 1], strides = [1, 1]} : vector<8x4xf32> to vector<8x1xf32>
    %36 = vector.extract_strided_slice %16 {offsets = [3, 0], sizes = [1, 384], strides = [1, 1]} : vector<4x384xf32> to vector<1x384xf32>
    %37 = vector.broadcast %35 : vector<8x1xf32> to vector<8x384xf32>
    %38 = vector.broadcast %36 : vector<1x384xf32> to vector<8x384xf32>
    %39 = arith.mulf %37, %38 : vector<8x384xf32>
    %40 = arith.addf %34, %39 : vector<8x384xf32>
    %cst_15 = arith.constant 0.000000e+00 : f32
    %41 = vector.broadcast %cst_15 : f32 to vector<8x384xf32>
    %42 = arith.maximumf %40, %41 : vector<8x384xf32>
    %43 = arith.truncf %42 : vector<8x384xf32> to vector<8x384xbf16>
    %c0_16 = arith.constant 0 : index
    %c0_17 = arith.constant 0 : index
    %44 = vector.load %arg8[%c0_16, %c0_17] : memref<384x8xbf16, #tpu.memory_space<vmem>>, vector<384x8xbf16>
    %cst_18 = arith.constant dense<0.000000e+00> : vector<8x8xf32>
    %45 = tpu.matmul %43, %44, %cst_18 {dimension_numbers = #tpu.dot_dimension_numbers<[1], [0], [0], [1], [0, 0, 1, 1], [], []>} : vector<8x384xbf16>, vector<384x8xbf16>, vector<8x8xf32> -> vector<8x8xf32>
    %c0_19 = arith.constant 0 : index
    %c0_20 = arith.constant 0 : index
    %46 = vector.load %arg9[%c0_19, %c0_20] : memref<1x8xf32, #tpu.memory_space<vmem>>, vector<1x8xf32>
    %47 = vector.broadcast %46 : vector<1x8xf32> to vector<8x8xf32>
    %48 = arith.addf %45, %47 : vector<8x8xf32>
    %49 = arith.negf %48 : vector<8x8xf32>
    %50 = math.exp %49 : vector<8x8xf32>
    %cst_21 = arith.constant 1.000000e+00 : f32
    %51 = vector.broadcast %cst_21 : f32 to vector<8x8xf32>
    %52 = arith.addf %51, %50 : vector<8x8xf32>
    %53 = arith.divf %51, %52 : vector<8x8xf32>
    %c0_22 = arith.constant 0 : index
    %c0_23 = arith.constant 0 : index
    %54 = vector.load %arg10[%c0_22, %c0_23] : memref<8x8xf32, #tpu.memory_space<vmem>>, vector<8x8xf32>
    tpu.vector_store %arg10[%c0_22, %c0_23], %53 {strides = array<i32>} : memref<8x8xf32, #tpu.memory_space<vmem>>, vector<8x8xf32>,
    return
  }
  func.func @transform_0(%arg0: i32) -> (i32, i32) {
    %c0_i32 = arith.constant 0 : i32
    %c0_i32_0 = arith.constant 0 : i32
    return %arg0, %c0_i32 : i32, i32
  }
  func.func @transform_1(%arg0: i32) -> (i32, i32) {
    %c0_i32 = arith.constant 0 : i32
    %c0_i32_0 = arith.constant 0 : i32
    return %arg0, %c0_i32 : i32, i32
  }
  func.func @transform_2(%arg0: i32) -> (i32, i32) {
    %c0_i32 = arith.constant 0 : i32
    %c0_i32_0 = arith.constant 0 : i32
    %c0_i32_1 = arith.constant 0 : i32
    return %c0_i32, %c0_i32_0 : i32, i32
  }
  func.func @transform_3(%arg0: i32) -> (i32, i32) {
    %c0_i32 = arith.constant 0 : i32
    %c0_i32_0 = arith.constant 0 : i32
    %c0_i32_1 = arith.constant 0 : i32
    return %c0_i32, %c0_i32_0 : i32, i32
  }
  func.func @transform_4(%arg0: i32) -> (i32, i32) {
    %c0_i32 = arith.constant 0 : i32
    %c0_i32_0 = arith.constant 0 : i32
    %c0_i32_1 = arith.constant 0 : i32
    return %c0_i32, %c0_i32_0 : i32, i32
  }
  func.func @transform_5(%arg0: i32) -> (i32, i32) {
    %c0_i32 = arith.constant 0 : i32
    %c0_i32_0 = arith.constant 0 : i32
    %c0_i32_1 = arith.constant 0 : i32
    return %c0_i32, %c0_i32_0 : i32, i32
  }
  func.func @transform_6(%arg0: i32) -> (i32, i32) {
    %c0_i32 = arith.constant 0 : i32
    %c0_i32_0 = arith.constant 0 : i32
    %c0_i32_1 = arith.constant 0 : i32
    return %c0_i32, %c0_i32_0 : i32, i32
  }
  func.func @transform_7(%arg0: i32) -> (i32, i32) {
    %c0_i32 = arith.constant 0 : i32
    %c0_i32_0 = arith.constant 0 : i32
    %c0_i32_1 = arith.constant 0 : i32
    return %c0_i32, %c0_i32_0 : i32, i32
  }
  func.func @transform_8(%arg0: i32) -> (i32, i32) {
    %c0_i32 = arith.constant 0 : i32
    %c0_i32_0 = arith.constant 0 : i32
    %c0_i32_1 = arith.constant 0 : i32
    return %c0_i32, %c0_i32_0 : i32, i32
  }
  func.func @transform_9(%arg0: i32) -> (i32, i32) {
    %c0_i32 = arith.constant 0 : i32
    %c0_i32_0 = arith.constant 0 : i32
    return %arg0, %c0_i32 : i32, i32
  }
}

</mosaic_0001>

<llo_original>
// kernel: tpu_custom_call.1
$region0: #{tpu_custom_call.1}
  #allocation0 [shape = 'u32[]', space=smem, size = 0x4, offset = 0x4, fixed_abs, tag = 'smem constant byte address 0x4 - core index']
  #allocation1 [shape = 'u32[144,128]{1,0:T(1,128)}', space=vmem, size = 0x12000, scoped, tag = 'internal scratch']
  %s0 = inlined_call_operand.vmem [shape: f32[8,16], index: 0, kind: input, shape index: {}]
  %s1 = inlined_call_operand.vmem [shape: f32[8,4], index: 1, kind: input, shape index: {}]
  %s2 = inlined_call_operand.vmem [shape: bf16[16,512], index: 2, kind: input, shape index: {}]
  %s3 = inlined_call_operand.vmem [shape: f32[1,512], index: 3, kind: input, shape index: {}]
  %s4 = inlined_call_operand.hbm [shape: bf16[512,384], index: 4, kind: input, shape index: {}]
  %s5 = inlined_call_operand.vmem [shape: f32[4,384], index: 5, kind: input, shape index: {}]
  %s6 = inlined_call_operand.vmem [shape: f32[1,384], index: 6, kind: input, shape index: {}]
  %s7 = inlined_call_operand.vmem [shape: bf16[384,8], index: 7, kind: input, shape index: {}]
  %s8 = inlined_call_operand.vmem [shape: f32[1,8], index: 8, kind: input, shape index: {}]
  %s9 = inlined_call_operand.hbm [shape: f32[8,8], index: 9, kind: output, shape index: {}]
  %s10 = sld [smem:[#allocation0]]
  $region50: #{tpu_custom_call.1} parent=0
    _
  %s12 = ssub.s32 1, %s10
  %s13 = scalar_select 0, %s12, %s10
  $region1: #{tpu_custom_call.1} parent=0
    #allocation2 [shape = 'u8[393216]{0}', space=vmem, size = 0x60000, scoped, tag = 'input window, operand 4, single buffered']
    #allocation3 [shape = 's32[1]{0}', space=sflag, size = 0x4, scoped, tag = 'scoped memory for tpu_custom_call.1']
    #allocation4 [shape = 's32[1]{0}', space=sflag, size = 0x4, scoped, tag = 'scoped memory for tpu_custom_call.1']
    #allocation5 [shape = 'u8[4096]{0}', space=vmem, size = 0x1000, scoped, tag = 'output window, operand 0, single buffered']
    %14 = vsyncpa [#allocation3], 0
    %15 = vsyncpa [#allocation4], 0
    // Predicated region
    $region2: #{tpu_custom_call.1} parent=1 // pred_check
      _
    $region3: #{tpu_custom_call.1} parent=1 // pred_check_branch
      %17 = sbr.rel (0) target = $region5
    $region4: #{tpu_custom_call.1} parent=1 // pred_region
      _
    $region5: #{tpu_custom_call.1} parent=1 // pred_fallthru
      _
    // Predicated region
    $region6: #{tpu_custom_call.1} parent=1 // pred_check
      _
    $region7: #{tpu_custom_call.1} parent=1 // pred_check_branch
      %19 = sbr.rel (0) target = $region9
    $region8: #{tpu_custom_call.1} parent=1 // pred_region
      _
    $region9: #{tpu_custom_call.1} parent=1 // pred_fallthru
      _
    // Predicated region
    $region10: #{tpu_custom_call.1} parent=1 // pred_check
      _
    $region11: #{tpu_custom_call.1} parent=1 // pred_check_branch
      %21 = sbr.rel (0) target = $region13
    $region12: #{tpu_custom_call.1} parent=1 // pred_region
      _
    $region13: #{tpu_custom_call.1} parent=1 // pred_fallthru
      _
    // Predicated region
    $region14: #{tpu_custom_call.1} parent=1 // pred_check
      _
    $region15: #{tpu_custom_call.1} parent=1 // pred_check_branch
      %23 = sbr.rel (0) target = $region17
    $region16: #{tpu_custom_call.1} parent=1 // pred_region
      _
    $region17: #{tpu_custom_call.1} parent=1 // pred_fallthru
      _
    // Predicated region
    $region18: #{tpu_custom_call.1} parent=1 // pred_check
      _
    $region19: #{tpu_custom_call.1} parent=1 // pred_check_branch
      %25 = sbr.rel (0) target = $region21
    $region20: #{tpu_custom_call.1} parent=1 // pred_region
      %s27 = ssub.s32 12288, 12288
      %28 = vsyncadd [#allocation3], %s27
      %s29 = sshll.u32 [#allocation2], 4
      %s30 = int_to_ptr.vmem [resolvable:$true] %s29
      %35 = dma.hbm_to_vmem [thread:$0]  %s4, 12288, %s30, [#allocation3], 192, 192, 12
    $region21: #{tpu_custom_call.1} parent=1 // pred_fallthru
      _
    // Predicated region
    $region22: #{tpu_custom_call.1} parent=1 // pred_check
      _
    $region23: #{tpu_custom_call.1} parent=1 // pred_check_branch
      %37 = sbr.rel (0) target = $region25
    $region24: #{tpu_custom_call.1} parent=1 // pred_region
      _
    $region25: #{tpu_custom_call.1} parent=1 // pred_fallthru
      _
    // Predicated region
    $region26: #{tpu_custom_call.1} parent=1 // pred_check
      _
    $region27: #{tpu_custom_call.1} parent=1 // pred_check_branch
      %39 = sbr.rel (0) target = $region29
    $region28: #{tpu_custom_call.1} parent=1 // pred_region
      _
    $region29: #{tpu_custom_call.1} parent=1 // pred_fallthru
      _
    // Predicated region
    $region30: #{tpu_custom_call.1} parent=1 // pred_check
      _
    $region31: #{tpu_custom_call.1} parent=1 // pred_check_branch
      %41 = sbr.rel (0) target = $region33
    $region32: #{tpu_custom_call.1} parent=1 // pred_region
      _
    $region33: #{tpu_custom_call.1} parent=1 // pred_fallthru
      _
    // Predicated region
    $region34: #{tpu_custom_call.1} parent=1 // pred_check
      _
    $region35: #{tpu_custom_call.1} parent=1 // pred_check_branch
      %43 = sbr.rel (0) target = $region37
    $region36: #{tpu_custom_call.1} parent=1 // pred_region
      _
    $region37: #{tpu_custom_call.1} parent=1 // pred_fallthru
      _
    // Predicated region
    $region38: #{tpu_custom_call.1} parent=1 // pred_check
      _
    $region39: #{tpu_custom_call.1} parent=1 // pred_check_branch
      %45 = sbr.rel (0) target = $region41
    $region40: #{tpu_custom_call.1} parent=1 // pred_region
      %46 = dma.done [#allocation3], 12288
    $region41: #{tpu_custom_call.1} parent=1 // pred_fallthru
      _
    %v48 = vld [vmem:[%s0] sm:$0xff]
    %v49 = vpack.c.bf16 %v48, %v48
    %v50 = vld [vmem:[%s2] sm:$0xff]
    %v51 = vld [vmem:[%s2 + $0x8] sm:$0xff]
    %v52 = vld [vmem:[%s2 + $0x10] sm:$0xff]
    %v53 = vld [vmem:[%s2 + $0x18] sm:$0xff]
    %v54 = vld [vmem:[%s3] sm:$0xf]
    %v56 = vlaneseq
    %v57 = vshrl.u32 %v56, 7
    %v58 = vsub.s32 0, %v57
    %v59 = vrot.slane %v54, %v58
    %v60 = vlaneseq
    %v61 = vshrl.u32 %v60, 7
    %v62 = vsub.s32 1, %v61
    %v63 = vrot.slane %v54, %v62
    %v64 = vlaneseq
    %v65 = vshrl.u32 %v64, 7
    %v66 = vsub.s32 2, %v65
    %v67 = vrot.slane %v54, %v66
    %v68 = vlaneseq
    %v69 = vshrl.u32 %v68, 7
    %v70 = vsub.s32 3, %v69
    %v71 = vrot.slane %v54, %v70
    %v80 = vunpack.c.l.b16 %v50
    %v81 = vunpack.c.h.b16 %v50
    %v82 = vunpack.c.l.b16 %v51
    %v83 = vunpack.c.h.b16 %v51
    %v84 = vunpack.c.l.b16 %v52
    %v85 = vunpack.c.h.b16 %v52
    %v86 = vunpack.c.l.b16 %v53
    %v87 = vunpack.c.h.b16 %v53
    %v88 = vpack.c.b16 %v84, %v80
    %v89 = vpack.c.b16 %v85, %v81
    %v90 = vpack.c.b16 %v86, %v82
    %v91 = vpack.c.b16 %v87, %v83
    %vm96 = vcmask 130048
    %v98 = vsel %vm96, %v49, 0
    %100 = vmatprep.subr.bf16.mxu0 0
    %101 = vmatpush1.bf16.msra.mxu0 0
    %102 = vmatprep.subr.bf16.mxu0 0
    %103 = vmatpush1.bf16.msra.mxu0 0
    %104 = vmatprep.subr.bf16.mxu0 0
    %105 = vmatpush1.bf16.msra.mxu0 0
    %106 = vmatprep.subr.bf16.mxu0 0
    %107 = vmatpush1.bf16.msra.mxu0 0
    %108 = vmatprep.subr.bf16.mxu0 0
    %109 = vmatpush1.bf16.msra.mxu0 0
    %110 = vmatprep.subr.bf16.mxu0 0
    %111 = vmatpush1.bf16.msra.mxu0 0
    %112 = vmatprep.subr.bf16.mxu0 0
    %113 = vmatpush1.bf16.msra.mxu0 0
    %114 = vmatprep.subr.bf16.mxu0 %v89
    %115 = vmatpush1.bf16.msra.mxu0 %v88
    %116 = vmatprep.subr.bf16.mxu0 0
    %117 = vmatpush2.bf16.msra.mxu0 0
    %118 = vmatprep.subr.bf16.mxu0 0
    %119 = vmatpush2.bf16.msra.mxu0 0
    %120 = vmatprep.subr.bf16.mxu0 0
    %121 = vmatpush2.bf16.msra.mxu0 0
    %122 = vmatprep.subr.bf16.mxu0 0
    %123 = vmatpush2.bf16.msra.mxu0 0
    %124 = vmatprep.subr.bf16.mxu0 0
    %125 = vmatpush2.bf16.msra.mxu0 0
    %126 = vmatprep.subr.bf16.mxu0 0
    %127 = vmatpush2.bf16.msra.mxu0 0
    %128 = vmatprep.subr.bf16.mxu0 0
    %129 = vmatpush2.bf16.msra.mxu0 0
    %130 = vmatprep.subr.bf16.mxu0 0
    %131 = vmatpush2.bf16.msra.mxu0 0
    %132 = vmatprep.mubr.bf16.mxu0 0
    %133 = vmatmul.mubr.bf16.gmra.mxu0 %v98
    %v134 = vpop.f32.mrf.mxu0
    %v135 = vadd.f32 %v59, %v134
    %v136 = vpop.f32.mrf.mxu0
    %v137 = vadd.f32 %v63, %v136
    %v138 = vpop.f32.mrf.mxu0
    %v139 = vpop.f32.mrf.mxu0
    %140 = vdwg.mxu0
    %141 = vmatprep.subr.bf16.mxu0 0
    %142 = vmatpush1.bf16.msra.mxu0 0
    %143 = vmatprep.subr.bf16.mxu0 0
    %144 = vmatpush1.bf16.msra.mxu0 0
    %145 = vmatprep.subr.bf16.mxu0 0
    %146 = vmatpush1.bf16.msra.mxu0 0
    %147 = vmatprep.subr.bf16.mxu0 0
    %148 = vmatpush1.bf16.msra.mxu0 0
    %149 = vmatprep.subr.bf16.mxu0 0
    %150 = vmatpush1.bf16.msra.mxu0 0
    %151 = vmatprep.subr.bf16.mxu0 0
    %152 = vmatpush1.bf16.msra.mxu0 0
    %153 = vmatprep.subr.bf16.mxu0 0
    %154 = vmatpush1.bf16.msra.mxu0 0
    %155 = vmatprep.subr.bf16.mxu0 %v91
    %156 = vmatpush1.bf16.msra.mxu0 %v90
    %157 = vmatprep.subr.bf16.mxu0 0
    %158 = vmatpush2.bf16.msra.mxu0 0
    %159 = vmatprep.subr.bf16.mxu0 0
    %160 = vmatpush2.bf16.msra.mxu0 0
    %161 = vmatprep.subr.bf16.mxu0 0
    %162 = vmatpush2.bf16.msra.mxu0 0
    %163 = vmatprep.subr.bf16.mxu0 0
    %164 = vmatpush2.bf16.msra.mxu0 0
    %165 = vmatprep.subr.bf16.mxu0 0
    %166 = vmatpush2.bf16.msra.mxu0 0
    %167 = vmatprep.subr.bf16.mxu0 0
    %168 = vmatpush2.bf16.msra.mxu0 0
    %169 = vmatprep.subr.bf16.mxu0 0
    %170 = vmatpush2.bf16.msra.mxu0 0
    %171 = vmatprep.subr.bf16.mxu0 0
    %172 = vmatpush2.bf16.msra.mxu0 0
    %173 = vmatprep.mubr.bf16.mxu0 0
    %174 = vmatmul.mubr.bf16.gmra.mxu0 %v98
    %v175 = vpop.f32.mrf.mxu0
    %v176 = vadd.f32 %v67, %v175
    %v177 = vpop.f32.mrf.mxu0
    %v178 = vadd.f32 %v71, %v177
    %v179 = vpop.f32.mrf.mxu0
    %v180 = vpop.f32.mrf.mxu0
    %181 = vdwg.mxu0
    %v182 = vmax.f32 %v135, 0.0
    %v183 = vmax.f32 %v137, 0.0
    %v184 = vmax.f32 %v176, 0.0
    %v185 = vmax.f32 %v178, 0.0
    %v186 = vpack.c.bf16 %v182, %v182
    %v187 = vpack.c.bf16 %v183, %v183
    %v188 = vpack.c.bf16 %v184, %v184
    %v189 = vpack.c.bf16 %v185, %v185
    %v190 = vld [vmem:[#allocation2] sm:$0xff]
    %v191 = vld [vmem:[#allocation2 + $0x8] sm:$0xf]
    %v192 = vld [vmem:[#allocation2 + $0xc] sm:$0xff]
    %v193 = vld [vmem:[#allocation2 + $0x14] sm:$0xf]
    %v194 = vld [vmem:[#allocation2 + $0x18] sm:$0xff]
    %v195 = vld [vmem:[#allocation2 + $0x20] sm:$0xf]
    %v196 = vld [vmem:[#allocation2 + $0x24] sm:$0xff]
    %v197 = vld [vmem:[#allocation2 + $0x2c] sm:$0xf]
    %v198 = vld [vmem:[#allocation2 + $0x30] sm:$0xff]
    %v199 = vld [vmem:[#allocation2 + $0x38] sm:$0xf]
    %v200 = vld [vmem:[#allocation2 + $0x3c] sm:$0xff]
    %v201 = vld [vmem:[#allocation2 + $0x44] sm:$0xf]
    %v202 = vld [vmem:[#allocation2 + $0x48] sm:$0xff]
    %v203 = vld [vmem:[#allocation2 + $0x50] sm:$0xf]
    %v204 = vld [vmem:[#allocation2 + $0x54] sm:$0xff]
    %v205 = vld [vmem:[#allocation2 + $0x5c] sm:$0xf]
    %v206 = vld [vmem:[#allocation2 + $0x60] sm:$0xff]
    %v207 = vld [vmem:[#allocation2 + $0x68] sm:$0xf]
    %v208 = vld [vmem:[#allocation2 + $0x6c] sm:$0xff]
    %v209 = vld [vmem:[#allocation2 + $0x74] sm:$0xf]
    %v210 = vld [vmem:[#allocation2 + $0x78] sm:$0xff]
    %v211 = vld [vmem:[#allocation2 + $0x80] sm:$0xf]
    %v212 = vld [vmem:[#allocation2 + $0x84] sm:$0xff]
    %v213 = vld [vmem:[#allocation2 + $0x8c] sm:$0xf]
    %v214 = vld [vmem:[#allocation2 + $0x90] sm:$0xff]
    %v215 = vld [vmem:[#allocation2 + $0x98] sm:$0xf]
    %v216 = vld [vmem:[#allocation2 + $0x9c] sm:$0xff]
    %v217 = vld [vmem:[#allocation2 + $0xa4] sm:$0xf]
    %v218 = vld [vmem:[#allocation2 + $0xa8] sm:$0xff]
    %v219 = vld [vmem:[#allocation2 + $0xb0] sm:$0xf]
    %v220 = vld [vmem:[#allocation2 + $0xb4] sm:$0xff]
    %v221 = vld [vmem:[#allocation2 + $0xbc] sm:$0xf]
    %v222 = vld [vmem:[#allocation2 + $0xc0] sm:$0xff]
    %v223 = vld [vmem:[#allocation2 + $0xc8] sm:$0xf]
    %v224 = vld [vmem:[#allocation2 + $0xcc] sm:$0xff]
    %v225 = vld [vmem:[#allocation2 + $0xd4] sm:$0xf]
    %v226 = vld [vmem:[#allocation2 + $0xd8] sm:$0xff]
    %v227 = vld [vmem:[#allocation2 + $0xe0] sm:$0xf]
    %v228 = vld [vmem:[#allocation2 + $0xe4] sm:$0xff]
    %v229 = vld [vmem:[#allocation2 + $0xec] sm:$0xf]
    %v230 = vld [vmem:[#allocation2 + $0xf0] sm:$0xff]
    %v231 = vld [vmem:[#allocation2 + $0xf8] sm:$0xf]
    %v232 = vld [vmem:[#allocation2 + $0xfc] sm:$0xff]
    %v233 = vld [vmem:[#allocation2 + $0x104] sm:$0xf]
    %v234 = vld [vmem:[#allocation2 + $0x108] sm:$0xff]
    %v235 = vld [vmem:[#allocation2 + $0x110] sm:$0xf]
    %v236 = vld [vmem:[#allocation2 + $0x114] sm:$0xff]
    %v237 = vld [vmem:[#allocation2 + $0x11c] sm:$0xf]
    %v238 = vld [vmem:[#allocation2 + $0x120] sm:$0xff]
    %v239 = vld [vmem:[#allocation2 + $0x128] sm:$0xf]
    %v240 = vld [vmem:[#allocation2 + $0x12c] sm:$0xff]
    %v241 = vld [vmem:[#allocation2 + $0x134] sm:$0xf]
    %v242 = vld [vmem:[#allocation2 + $0x138] sm:$0xff]
    %v243 = vld [vmem:[#allocation2 + $0x140] sm:$0xf]
    %v244 = vld [vmem:[#allocation2 + $0x144] sm:$0xff]
    %v245 = vld [vmem:[#allocation2 + $0x14c] sm:$0xf]
    %v246 = vld [vmem:[#allocation2 + $0x150] sm:$0xff]
    %v247 = vld [vmem:[#allocation2 + $0x158] sm:$0xf]
    %v248 = vld [vmem:[#allocation2 + $0x15c] sm:$0xff]
    %v249 = vld [vmem:[#allocation2 + $0x164] sm:$0xf]
    %v250 = vld [vmem:[#allocation2 + $0x168] sm:$0xff]
    %v251 = vld [vmem:[#allocation2 + $0x170] sm:$0xf]
    %v252 = vld [vmem:[#allocation2 + $0x174] sm:$0xff]
    %v253 = vld [vmem:[#allocation2 + $0x17c] sm:$0xf]
    %v254 = vld [vmem:[#allocation2 + $0x180] sm:$0xff]
    %v255 = vld [vmem:[#allocation2 + $0x188] sm:$0xf]
    %v256 = vld [vmem:[#allocation2 + $0x18c] sm:$0xff]
    %v257 = vld [vmem:[#allocation2 + $0x194] sm:$0xf]
    %v258 = vld [vmem:[#allocation2 + $0x198] sm:$0xff]
    %v259 = vld [vmem:[#allocation2 + $0x1a0] sm:$0xf]
    %v260 = vld [vmem:[#allocation2 + $0x1a4] sm:$0xff]
    %v261 = vld [vmem:[#allocation2 + $0x1ac] sm:$0xf]
    %v262 = vld [vmem:[#allocation2 + $0x1b0] sm:$0xff]
    %v263 = vld [vmem:[#allocation2 + $0x1b8] sm:$0xf]
    %v264 = vld [vmem:[#allocation2 + $0x1bc] sm:$0xff]
    %v265 = vld [vmem:[#allocation2 + $0x1c4] sm:$0xf]
    %v266 = vld [vmem:[#allocation2 + $0x1c8] sm:$0xff]
    %v267 = vld [vmem:[#allocation2 + $0x1d0] sm:$0xf]
    %v268 = vld [vmem:[#allocation2 + $0x1d4] sm:$0xff]
    %v269 = vld [vmem:[#allocation2 + $0x1dc] sm:$0xf]
    %v270 = vld [vmem:[#allocation2 + $0x1e0] sm:$0xff]
    %v271 = vld [vmem:[#allocation2 + $0x1e8] sm:$0xf]
    %v272 = vld [vmem:[#allocation2 + $0x1ec] sm:$0xff]
    %v273 = vld [vmem:[#allocation2 + $0x1f4] sm:$0xf]
    %v274 = vld [vmem:[#allocation2 + $0x1f8] sm:$0xff]
    %v275 = vld [vmem:[#allocation2 + $0x200] sm:$0xf]
    %v276 = vld [vmem:[#allocation2 + $0x204] sm:$0xff]
    %v277 = vld [vmem:[#allocation2 + $0x20c] sm:$0xf]
    %v278 = vld [vmem:[#allocation2 + $0x210] sm:$0xff]
    %v279 = vld [vmem:[#allocation2 + $0x218] sm:$0xf]
    %v280 = vld [vmem:[#allocation2 + $0x21c] sm:$0xff]
    %v281 = vld [vmem:[#allocation2 + $0x224] sm:$0xf]
    %v282 = vld [vmem:[#allocation2 + $0x228] sm:$0xff]
    %v283 = vld [vmem:[#allocation2 + $0x230] sm:$0xf]
    %v284 = vld [vmem:[#allocation2 + $0x234] sm:$0xff]
    %v285 = vld [vmem:[#allocation2 + $0x23c] sm:$0xf]
    %v286 = vld [vmem:[#allocation2 + $0x240] sm:$0xff]
    %v287 = vld [vmem:[#allocation2 + $0x248] sm:$0xf]
    %v288 = vld [vmem:[#allocation2 + $0x24c] sm:$0xff]
    %v289 = vld [vmem:[#allocation2 + $0x254] sm:$0xf]
    %v290 = vld [vmem:[#allocation2 + $0x258] sm:$0xff]
    %v291 = vld [vmem:[#allocation2 + $0x260] sm:$0xf]
    %v292 = vld [vmem:[#allocation2 + $0x264] sm:$0xff]
    %v293 = vld [vmem:[#allocation2 + $0x26c] sm:$0xf]
    %v294 = vld [vmem:[#allocation2 + $0x270] sm:$0xff]
    %v295 = vld [vmem:[#allocation2 + $0x278] sm:$0xf]
    %v296 = vld [vmem:[#allocation2 + $0x27c] sm:$0xff]
    %v297 = vld [vmem:[#allocation2 + $0x284] sm:$0xf]
    %v298 = vld [vmem:[#allocation2 + $0x288] sm:$0xff]
    %v299 = vld [vmem:[#allocation2 + $0x290] sm:$0xf]
    %v300 = vld [vmem:[#allocation2 + $0x294] sm:$0xff]
    %v301 = vld [vmem:[#allocation2 + $0x29c] sm:$0xf]
    %v302 = vld [vmem:[#allocation2 + $0x2a0] sm:$0xff]
    %v303 = vld [vmem:[#allocation2 + $0x2a8] sm:$0xf]
    %v304 = vld [vmem:[#allocation2 + $0x2ac] sm:$0xff]
    %v305 = vld [vmem:[#allocation2 + $0x2b4] sm:$0xf]
    %v306 = vld [vmem:[#allocation2 + $0x2b8] sm:$0xff]
    %v307 = vld [vmem:[#allocation2 + $0x2c0] sm:$0xf]
    %v308 = vld [vmem:[#allocation2 + $0x2c4] sm:$0xff]
    %v309 = vld [vmem:[#allocation2 + $0x2cc] sm:$0xf]
    %v310 = vld [vmem:[#allocation2 + $0x2d0] sm:$0xff]
    %v311 = vld [vmem:[#allocation2 + $0x2d8] sm:$0xf]
    %v312 = vld [vmem:[#allocation2 + $0x2dc] sm:$0xff]
    %v313 = vld [vmem:[#allocation2 + $0x2e4] sm:$0xf]
    %v314 = vld [vmem:[#allocation2 + $0x2e8] sm:$0xff]
    %v315 = vld [vmem:[#allocation2 + $0x2f0] sm:$0xf]
    %v316 = vld [vmem:[#allocation2 + $0x2f4] sm:$0xff]
    %v317 = vld [vmem:[#allocation2 + $0x2fc] sm:$0xf]
    %v318 = vld [vmem:[%s6] sm:$0x7]
    %v320 = vlaneseq
    %v321 = vshrl.u32 %v320, 7
    %v322 = vsub.s32 0, %v321
    %v323 = vrot.slane %v318, %v322
    %v324 = vlaneseq
    %v325 = vshrl.u32 %v324, 7
    %v326 = vsub.s32 1, %v325
    %v327 = vrot.slane %v318, %v326
    %v328 = vlaneseq
    %v329 = vshrl.u32 %v328, 7
    %v330 = vsub.s32 2, %v329
    %v331 = vrot.slane %v318, %v330
    %v463 = vunpack.c.l.b16 %v190
    %v464 = vunpack.c.h.b16 %v190
    %v465 = vunpack.c.l.b16 %v191
    %v466 = vunpack.c.l.b16 %v192
    %v467 = vunpack.c.h.b16 %v192
    %v468 = vunpack.c.l.b16 %v193
    %v469 = vunpack.c.l.b16 %v194
    %v470 = vunpack.c.h.b16 %v194
    %v471 = vunpack.c.l.b16 %v195
    %v472 = vunpack.c.l.b16 %v196
    %v473 = vunpack.c.h.b16 %v196
    %v474 = vunpack.c.l.b16 %v197
    %v475 = vunpack.c.l.b16 %v198
    %v476 = vunpack.c.h.b16 %v198
    %v477 = vunpack.c.l.b16 %v199
    %v478 = vunpack.c.l.b16 %v200
    %v479 = vunpack.c.h.b16 %v200
    %v480 = vunpack.c.l.b16 %v201
    %v481 = vunpack.c.l.b16 %v202
    %v482 = vunpack.c.h.b16 %v202
    %v483 = vunpack.c.l.b16 %v203
    %v484 = vunpack.c.l.b16 %v204
    %v485 = vunpack.c.h.b16 %v204
    %v486 = vunpack.c.l.b16 %v205
    %v487 = vunpack.c.l.b16 %v206
    %v488 = vunpack.c.h.b16 %v206
    %v489 = vunpack.c.l.b16 %v207
    %v490 = vunpack.c.l.b16 %v208
    %v491 = vunpack.c.h.b16 %v208
    %v492 = vunpack.c.l.b16 %v209
    %v493 = vunpack.c.l.b16 %v210
    %v494 = vunpack.c.h.b16 %v210
    %v495 = vunpack.c.l.b16 %v211
    %v496 = vunpack.c.l.b16 %v212
    %v497 = vunpack.c.h.b16 %v212
    %v498 = vunpack.c.l.b16 %v213
    %v499 = vunpack.c.l.b16 %v214
    %v500 = vunpack.c.h.b16 %v214
    %v501 = vunpack.c.l.b16 %v215
    %v502 = vunpack.c.l.b16 %v216
    %v503 = vunpack.c.h.b16 %v216
    %v504 = vunpack.c.l.b16 %v217
    %v505 = vunpack.c.l.b16 %v218
    %v506 = vunpack.c.h.b16 %v218
    %v507 = vunpack.c.l.b16 %v219
    %v508 = vunpack.c.l.b16 %v220
    %v509 = vunpack.c.h.b16 %v220
    %v510 = vunpack.c.l.b16 %v221
    %v511 = vunpack.c.l.b16 %v222
    %v512 = vunpack.c.h.b16 %v222
    %v513 = vunpack.c.l.b16 %v223
    %v514 = vunpack.c.l.b16 %v224
    %v515 = vunpack.c.h.b16 %v224
    %v516 = vunpack.c.l.b16 %v225
    %v517 = vunpack.c.l.b16 %v226
    %v518 = vunpack.c.h.b16 %v226
    %v519 = vunpack.c.l.b16 %v227
    %v520 = vunpack.c.l.b16 %v228
    %v521 = vunpack.c.h.b16 %v228
    %v522 = vunpack.c.l.b16 %v229
    %v523 = vunpack.c.l.b16 %v230
    %v524 = vunpack.c.h.b16 %v230
    %v525 = vunpack.c.l.b16 %v231
    %v526 = vunpack.c.l.b16 %v232
    %v527 = vunpack.c.h.b16 %v232
    %v528 = vunpack.c.l.b16 %v233
    %v529 = vunpack.c.l.b16 %v234
    %v530 = vunpack.c.h.b16 %v234
    %v531 = vunpack.c.l.b16 %v235
    %v532 = vunpack.c.l.b16 %v236
    %v533 = vunpack.c.h.b16 %v236
    %v534 = vunpack.c.l.b16 %v237
    %v535 = vunpack.c.l.b16 %v238
    %v536 = vunpack.c.h.b16 %v238
    %v537 = vunpack.c.l.b16 %v239
    %v538 = vunpack.c.l.b16 %v240
    %v539 = vunpack.c.h.b16 %v240
    %v540 = vunpack.c.l.b16 %v241
    %v541 = vunpack.c.l.b16 %v242
    %v542 = vunpack.c.h.b16 %v242
    %v543 = vunpack.c.l.b16 %v243
    %v544 = vunpack.c.l.b16 %v244
    %v545 = vunpack.c.h.b16 %v244
    %v546 = vunpack.c.l.b16 %v245
    %v547 = vunpack.c.l.b16 %v246
    %v548 = vunpack.c.h.b16 %v246
    %v549 = vunpack.c.l.b16 %v247
    %v550 = vunpack.c.l.b16 %v248
    %v551 = vunpack.c.h.b16 %v248
    %v552 = vunpack.c.l.b16 %v249
    %v553 = vunpack.c.l.b16 %v250
    %v554 = vunpack.c.h.b16 %v250
    %v555 = vunpack.c.l.b16 %v251
    %v556 = vunpack.c.l.b16 %v252
    %v557 = vunpack.c.h.b16 %v252
    %v558 = vunpack.c.l.b16 %v253
    %v559 = vunpack.c.l.b16 %v254
    %v560 = vunpack.c.h.b16 %v254
    %v561 = vunpack.c.l.b16 %v255
    %v562 = vunpack.c.l.b16 %v256
    %v563 = vunpack.c.h.b16 %v256
    %v564 = vunpack.c.l.b16 %v257
    %v565 = vunpack.c.l.b16 %v258
    %v566 = vunpack.c.h.b16 %v258
    %v567 = vunpack.c.l.b16 %v259
    %v568 = vunpack.c.l.b16 %v260
    %v569 = vunpack.c.h.b16 %v260
    %v570 = vunpack.c.l.b16 %v261
    %v571 = vunpack.c.l.b16 %v262
    %v572 = vunpack.c.h.b16 %v262
    %v573 = vunpack.c.l.b16 %v263
    %v574 = vunpack.c.l.b16 %v264
    %v575 = vunpack.c.h.b16 %v264
    %v576 = vunpack.c.l.b16 %v265
    %v577 = vunpack.c.l.b16 %v266
    %v578 = vunpack.c.h.b16 %v266
    %v579 = vunpack.c.l.b16 %v267
    %v580 = vunpack.c.l.b16 %v268
    %v581 = vunpack.c.h.b16 %v268
    %v582 = vunpack.c.l.b16 %v269
    %v583 = vunpack.c.l.b16 %v270
    %v584 = vunpack.c.h.b16 %v270
    %v585 = vunpack.c.l.b16 %v271
    %v586 = vunpack.c.l.b16 %v272
    %v587 = vunpack.c.h.b16 %v272
    %v588 = vunpack.c.l.b16 %v273
    %v589 = vunpack.c.l.b16 %v274
    %v590 = vunpack.c.h.b16 %v274
    %v591 = vunpack.c.l.b16 %v275
    %v592 = vunpack.c.l.b16 %v276
    %v593 = vunpack.c.h.b16 %v276
    %v594 = vunpack.c.l.b16 %v277
    %v595 = vunpack.c.l.b16 %v278
    %v596 = vunpack.c.h.b16 %v278
    %v597 = vunpack.c.l.b16 %v279
    %v598 = vunpack.c.l.b16 %v280
    %v599 = vunpack.c.h.b16 %v280
    %v600 = vunpack.c.l.b16 %v281
    %v601 = vunpack.c.l.b16 %v282
    %v602 = vunpack.c.h.b16 %v282
    %v603 = vunpack.c.l.b16 %v283
    %v604 = vunpack.c.l.b16 %v284
    %v605 = vunpack.c.h.b16 %v284
    %v606 = vunpack.c.l.b16 %v285
    %v607 = vunpack.c.l.b16 %v286
    %v608 = vunpack.c.h.b16 %v286
    %v609 = vunpack.c.l.b16 %v287
    %v610 = vunpack.c.l.b16 %v288
    %v611 = vunpack.c.h.b16 %v288
    %v612 = vunpack.c.l.b16 %v289
    %v613 = vunpack.c.l.b16 %v290
    %v614 = vunpack.c.h.b16 %v290
    %v615 = vunpack.c.l.b16 %v291
    %v616 = vunpack.c.l.b16 %v292
    %v617 = vunpack.c.h.b16 %v292
    %v618 = vunpack.c.l.b16 %v293
    %v619 = vunpack.c.l.b16 %v294
    %v620 = vunpack.c.h.b16 %v294
    %v621 = vunpack.c.l.b16 %v295
    %v622 = vunpack.c.l.b16 %v296
    %v623 = vunpack.c.h.b16 %v296
    %v624 = vunpack.c.l.b16 %v297
    %v625 = vunpack.c.l.b16 %v298
    %v626 = vunpack.c.h.b16 %v298
    %v627 = vunpack.c.l.b16 %v299
    %v628 = vunpack.c.l.b16 %v300
    %v629 = vunpack.c.h.b16 %v300
    %v630 = vunpack.c.l.b16 %v301
    %v631 = vunpack.c.l.b16 %v302
    %v632 = vunpack.c.h.b16 %v302
    %v633 = vunpack.c.l.b16 %v303
    %v634 = vunpack.c.l.b16 %v304
    %v635 = vunpack.c.h.b16 %v304
    %v636 = vunpack.c.l.b16 %v305
    %v637 = vunpack.c.l.b16 %v306
    %v638 = vunpack.c.h.b16 %v306
    %v639 = vunpack.c.l.b16 %v307
    %v640 = vunpack.c.l.b16 %v308
    %v641 = vunpack.c.h.b16 %v308
    %v642 = vunpack.c.l.b16 %v309
    %v643 = vunpack.c.l.b16 %v310
    %v644 = vunpack.c.h.b16 %v310
    %v645 = vunpack.c.l.b16 %v311
    %v646 = vunpack.c.l.b16 %v312
    %v647 = vunpack.c.h.b16 %v312
    %v648 = vunpack.c.l.b16 %v313
    %v649 = vunpack.c.l.b16 %v314
    %v650 = vunpack.c.h.b16 %v314
    %v651 = vunpack.c.l.b16 %v315
    %v652 = vunpack.c.l.b16 %v316
    %v653 = vunpack.c.h.b16 %v316
    %v654 = vunpack.c.l.b16 %v317
    %v655 = vpack.c.b16 %v466, %v463
    %v656 = vpack.c.b16 %v467, %v464
    %v657 = vpack.c.b16 %v468, %v465
    %v658 = vpack.c.b16 %v472, %v469
    %v659 = vpack.c.b16 %v473, %v470
    %v660 = vpack.c.b16 %v474, %v471
    %v661 = vpack.c.b16 %v478, %v475
    %v662 = vpack.c.b16 %v479, %v476
    %v663 = vpack.c.b16 %v480, %v477
    %v664 = vpack.c.b16 %v484, %v481
    %v665 = vpack.c.b16 %v485, %v482
    %v666 = vpack.c.b16 %v486, %v483
    %v667 = vpack.c.b16 %v490, %v487
    %v668 = vpack.c.b16 %v491, %v488
    %v669 = vpack.c.b16 %v492, %v489
    %v670 = vpack.c.b16 %v496, %v493
    %v671 = vpack.c.b16 %v497, %v494
    %v672 = vpack.c.b16 %v498, %v495
    %v673 = vpack.c.b16 %v502, %v499
    %v674 = vpack.c.b16 %v503, %v500
    %v675 = vpack.c.b16 %v504, %v501
    %v676 = vpack.c.b16 %v508, %v505
    %v677 = vpack.c.b16 %v509, %v506
    %v678 = vpack.c.b16 %v510, %v507
    %v679 = vpack.c.b16 %v514, %v511
    %v680 = vpack.c.b16 %v515, %v512
    %v681 = vpack.c.b16 %v516, %v513
    %v682 = vpack.c.b16 %v520, %v517
    %v683 = vpack.c.b16 %v521, %v518
    %v684 = vpack.c.b16 %v522, %v519
    %v685 = vpack.c.b16 %v526, %v523
    %v686 = vpack.c.b16 %v527, %v524
    %v687 = vpack.c.b16 %v528, %v525
    %v688 = vpack.c.b16 %v532, %v529
    %v689 = vpack.c.b16 %v533, %v530
    %v690 = vpack.c.b16 %v534, %v531
    %v691 = vpack.c.b16 %v538, %v535
    %v692 = vpack.c.b16 %v539, %v536
    %v693 = vpack.c.b16 %v540, %v537
    %v694 = vpack.c.b16 %v544, %v541
    %v695 = vpack.c.b16 %v545, %v542
    %v696 = vpack.c.b16 %v546, %v543
    %v697 = vpack.c.b16 %v550, %v547
    %v698 = vpack.c.b16 %v551, %v548
    %v699 = vpack.c.b16 %v552, %v549
    %v700 = vpack.c.b16 %v556, %v553
    %v701 = vpack.c.b16 %v557, %v554
    %v702 = vpack.c.b16 %v558, %v555
    %v703 = vpack.c.b16 %v562, %v559
    %v704 = vpack.c.b16 %v563, %v560
    %v705 = vpack.c.b16 %v564, %v561
    %v706 = vpack.c.b16 %v568, %v565
    %v707 = vpack.c.b16 %v569, %v566
    %v708 = vpack.c.b16 %v570, %v567
    %v709 = vpack.c.b16 %v574, %v571
    %v710 = vpack.c.b16 %v575, %v572
    %v711 = vpack.c.b16 %v576, %v573
    %v712 = vpack.c.b16 %v580, %v577
    %v713 = vpack.c.b16 %v581, %v578
    %v714 = vpack.c.b16 %v582, %v579
    %v715 = vpack.c.b16 %v586, %v583
    %v716 = vpack.c.b16 %v587, %v584
    %v717 = vpack.c.b16 %v588, %v585
    %v718 = vpack.c.b16 %v592, %v589
    %v719 = vpack.c.b16 %v593, %v590
    %v720 = vpack.c.b16 %v594, %v591
    %v721 = vpack.c.b16 %v598, %v595
    %v722 = vpack.c.b16 %v599, %v596
    %v723 = vpack.c.b16 %v600, %v597
    %v724 = vpack.c.b16 %v604, %v601
    %v725 = vpack.c.b16 %v605, %v602
    %v726 = vpack.c.b16 %v606, %v603
    %v727 = vpack.c.b16 %v610, %v607
    %v728 = vpack.c.b16 %v611, %v608
    %v729 = vpack.c.b16 %v612, %v609
    %v730 = vpack.c.b16 %v616, %v613
    %v731 = vpack.c.b16 %v617, %v614
    %v732 = vpack.c.b16 %v618, %v615
    %v733 = vpack.c.b16 %v622, %v619
    %v734 = vpack.c.b16 %v623, %v620
    %v735 = vpack.c.b16 %v624, %v621
    %v736 = vpack.c.b16 %v628, %v625
    %v737 = vpack.c.b16 %v629, %v626
    %v738 = vpack.c.b16 %v630, %v627
    %v739 = vpack.c.b16 %v634, %v631
    %v740 = vpack.c.b16 %v635, %v632
    %v741 = vpack.c.b16 %v636, %v633
    %v742 = vpack.c.b16 %v640, %v637
    %v743 = vpack.c.b16 %v641, %v638
    %v744 = vpack.c.b16 %v642, %v639
    %v745 = vpack.c.b16 %v646, %v643
    %v746 = vpack.c.b16 %v647, %v644
    %v747 = vpack.c.b16 %v648, %v645
    %v748 = vpack.c.b16 %v652, %v649
    %v749 = vpack.c.b16 %v653, %v650
    %v750 = vpack.c.b16 %v654, %v651
    %847 = vmatprep.subr.bf16.mxu0 %v677
    %848 = vmatpush1.bf16.msra.mxu0 %v676
    %849 = vmatprep.subr.bf16.mxu0 %v674
    %850 = vmatpush1.bf16.msra.mxu0 %v673
    %851 = vmatprep.subr.bf16.mxu0 %v671
    %852 = vmatpush1.bf16.msra.mxu0 %v670
    %853 = vmatprep.subr.bf16.mxu0 %v668
    %854 = vmatpush1.bf16.msra.mxu0 %v667
    %855 = vmatprep.subr.bf16.mxu0 %v665
    %856 = vmatpush1.bf16.msra.mxu0 %v664
    %857 = vmatprep.subr.bf16.mxu0 %v662
    %858 = vmatpush1.bf16.msra.mxu0 %v661
    %859 = vmatprep.subr.bf16.mxu0 %v659
    %860 = vmatpush1.bf16.msra.mxu0 %v658
    %861 = vmatprep.subr.bf16.mxu0 %v656
    %862 = vmatpush1.bf16.msra.mxu0 %v655
    %863 = vmatprep.subr.bf16.mxu0 %v701
    %864 = vmatpush2.bf16.msra.mxu0 %v700
    %865 = vmatprep.subr.bf16.mxu0 %v698
    %866 = vmatpush2.bf16.msra.mxu0 %v697
    %867 = vmatprep.subr.bf16.mxu0 %v695
    %868 = vmatpush2.bf16.msra.mxu0 %v694
    %869 = vmatprep.subr.bf16.mxu0 %v692
    %870 = vmatpush2.bf16.msra.mxu0 %v691
    %871 = vmatprep.subr.bf16.mxu0 %v689
    %872 = vmatpush2.bf16.msra.mxu0 %v688
    %873 = vmatprep.subr.bf16.mxu0 %v686
    %874 = vmatpush2.bf16.msra.mxu0 %v685
    %875 = vmatprep.subr.bf16.mxu0 %v683
    %876 = vmatpush2.bf16.msra.mxu0 %v682
    %877 = vmatprep.subr.bf16.mxu0 %v680
    %878 = vmatpush2.bf16.msra.mxu0 %v679
    %879 = vmatprep.mubr.bf16.mxu0 %v187
    %880 = vmatmul.mubr.bf16.gmra.mxu0 %v186
    %v881 = vpop.f32.mrf.mxu0
    %v882 = vadd.f32 %v323, %v881
    %v883 = vpop.f32.mrf.mxu0
    %v884 = vadd.f32 %v327, %v883
    %v885 = vpop.f32.mrf.mxu0
    %v886 = vpop.f32.mrf.mxu0
    %887 = vdwg.mxu0
    %888 = vmatprep.subr.bf16.mxu0 %v725
    %889 = vmatpush1.bf16.msra.mxu0 %v724
    %890 = vmatprep.subr.bf16.mxu0 %v722
    %891 = vmatpush1.bf16.msra.mxu0 %v721
    %892 = vmatprep.subr.bf16.mxu0 %v719
    %893 = vmatpush1.bf16.msra.mxu0 %v718
    %894 = vmatprep.subr.bf16.mxu0 %v716
    %895 = vmatpush1.bf16.msra.mxu0 %v715
    %896 = vmatprep.subr.bf16.mxu0 %v713
    %897 = vmatpush1.bf16.msra.mxu0 %v712
    %898 = vmatprep.subr.bf16.mxu0 %v710
    %899 = vmatpush1.bf16.msra.mxu0 %v709
    %900 = vmatprep.subr.bf16.mxu0 %v707
    %901 = vmatpush1.bf16.msra.mxu0 %v706
    %902 = vmatprep.subr.bf16.mxu0 %v704
    %903 = vmatpush1.bf16.msra.mxu0 %v703
    %904 = vmatprep.subr.bf16.mxu0 %v749
    %905 = vmatpush2.bf16.msra.mxu0 %v748
    %906 = vmatprep.subr.bf16.mxu0 %v746
    %907 = vmatpush2.bf16.msra.mxu0 %v745
    %908 = vmatprep.subr.bf16.mxu0 %v743
    %909 = vmatpush2.bf16.msra.mxu0 %v742
    %910 = vmatprep.subr.bf16.mxu0 %v740
    %911 = vmatpush2.bf16.msra.mxu0 %v739
    %912 = vmatprep.subr.bf16.mxu0 %v737
    %913 = vmatpush2.bf16.msra.mxu0 %v736
    %914 = vmatprep.subr.bf16.mxu0 %v734
    %915 = vmatpush2.bf16.msra.mxu0 %v733
    %916 = vmatprep.subr.bf16.mxu0 %v731
    %917 = vmatpush2.bf16.msra.mxu0 %v730
    %918 = vmatprep.subr.bf16.mxu0 %v728
    %919 = vmatpush2.bf16.msra.mxu0 %v727
    %920 = vmatprep.mubr.bf16.mxu0 %v189
    %921 = vmatmul.mubr.bf16.gmra.mxu0 %v188
    %v922 = vpop.f32.mrf.mxu0
    %v923 = vadd.f32 %v882, %v922
    %v924 = vpop.f32.mrf.mxu0
    %v925 = vadd.f32 %v884, %v924
    %v926 = vpop.f32.mrf.mxu0
    %v927 = vpop.f32.mrf.mxu0
    %928 = vdwg.mxu0
    %929 = vmatprep.subr.bf16.mxu0 0
    %930 = vmatpush1.bf16.msra.mxu0 %v678
    %931 = vmatprep.subr.bf16.mxu0 0
    %932 = vmatpush1.bf16.msra.mxu0 %v675
    %933 = vmatprep.subr.bf16.mxu0 0
    %934 = vmatpush1.bf16.msra.mxu0 %v672
    %935 = vmatprep.subr.bf16.mxu0 0
    %936 = vmatpush1.bf16.msra.mxu0 %v669
    %937 = vmatprep.subr.bf16.mxu0 0
    %938 = vmatpush1.bf16.msra.mxu0 %v666
    %939 = vmatprep.subr.bf16.mxu0 0
    %940 = vmatpush1.bf16.msra.mxu0 %v663
    %941 = vmatprep.subr.bf16.mxu0 0
    %942 = vmatpush1.bf16.msra.mxu0 %v660
    %943 = vmatprep.subr.bf16.mxu0 0
    %944 = vmatpush1.bf16.msra.mxu0 %v657
    %945 = vmatprep.subr.bf16.mxu0 0
    %946 = vmatpush2.bf16.msra.mxu0 %v702
    %947 = vmatprep.subr.bf16.mxu0 0
    %948 = vmatpush2.bf16.msra.mxu0 %v699
    %949 = vmatprep.subr.bf16.mxu0 0
    %950 = vmatpush2.bf16.msra.mxu0 %v696
    %951 = vmatprep.subr.bf16.mxu0 0
    %952 = vmatpush2.bf16.msra.mxu0 %v693
    %953 = vmatprep.subr.bf16.mxu0 0
    %954 = vmatpush2.bf16.msra.mxu0 %v690
    %955 = vmatprep.subr.bf16.mxu0 0
    %956 = vmatpush2.bf16.msra.mxu0 %v687
    %957 = vmatprep.subr.bf16.mxu0 0
    %958 = vmatpush2.bf16.msra.mxu0 %v684
    %959 = vmatprep.subr.bf16.mxu0 0
    %960 = vmatpush2.bf16.msra.mxu0 %v681
    %961 = vmatprep.mubr.bf16.mxu0 %v187
    %962 = vmatmul.mubr.bf16.gmra.mxu0 %v186
    %v963 = vpop.f32.mrf.mxu0
    %v964 = vadd.f32 %v331, %v963
    %v965 = vpop.f32.mrf.mxu0
    %v966 = vpop.f32.mrf.mxu0
    %v967 = vpop.f32.mrf.mxu0
    %968 = vdwg.mxu0
    %969 = vmatprep.subr.bf16.mxu0 0
    %970 = vmatpush1.bf16.msra.mxu0 %v726
    %971 = vmatprep.subr.bf16.mxu0 0
    %972 = vmatpush1.bf16.msra.mxu0 %v723
    %973 = vmatprep.subr.bf16.mxu0 0
    %974 = vmatpush1.bf16.msra.mxu0 %v720
    %975 = vmatprep.subr.bf16.mxu0 0
    %976 = vmatpush1.bf16.msra.mxu0 %v717
    %977 = vmatprep.subr.bf16.mxu0 0
    %978 = vmatpush1.bf16.msra.mxu0 %v714
    %979 = vmatprep.subr.bf16.mxu0 0
    %980 = vmatpush1.bf16.msra.mxu0 %v711
    %981 = vmatprep.subr.bf16.mxu0 0
    %982 = vmatpush1.bf16.msra.mxu0 %v708
    %983 = vmatprep.subr.bf16.mxu0 0
    %984 = vmatpush1.bf16.msra.mxu0 %v705
    %985 = vmatprep.subr.bf16.mxu0 0
    %986 = vmatpush2.bf16.msra.mxu0 %v750
    %987 = vmatprep.subr.bf16.mxu0 0
    %988 = vmatpush2.bf16.msra.mxu0 %v747
    %989 = vmatprep.subr.bf16.mxu0 0
    %990 = vmatpush2.bf16.msra.mxu0 %v744
    %991 = vmatprep.subr.bf16.mxu0 0
    %992 = vmatpush2.bf16.msra.mxu0 %v741
    %993 = vmatprep.subr.bf16.mxu0 0
    %994 = vmatpush2.bf16.msra.mxu0 %v738
    %995 = vmatprep.subr.bf16.mxu0 0
    %996 = vmatpush2.bf16.msra.mxu0 %v735
    %997 = vmatprep.subr.bf16.mxu0 0
    %998 = vmatpush2.bf16.msra.mxu0 %v732
    %999 = vmatprep.subr.bf16.mxu0 0
    %1000 = vmatpush2.bf16.msra.mxu0 %v729
    %1001 = vmatprep.mubr.bf16.mxu0 %v189
    %1002 = vmatmul.mubr.bf16.gmra.mxu0 %v188
    %v1003 = vpop.f32.mrf.mxu0
    %v1004 = vadd.f32 %v964, %v1003
    %v1005 = vpop.f32.mrf.mxu0
    %v1006 = vpop.f32.mrf.mxu0
    %v1007 = vpop.f32.mrf.mxu0
    %1008 = vdwg.mxu0
    %v1009 = vld [vmem:[%s1] sm:$0xff]
    %v1010 = vld [vmem:[%s5] sm:$0xff]
    %v1011 = vld [vmem:[%s5 + $0x8] sm:$0xf]
    %1013 = vset.pattern.permute.xlu0 0
    %1014 = vperm.xlu0 %1013, %v1009
    %v1015 = vpop.permute.xlu0 %1014
    %v1019 = vlaneseq
    %v1020 = vshrl.u32 %v1019, 7
    %v1021 = vsub.s32 0, %v1020
    %v1022 = vrot.slane %v1010, %v1021
    %v1023 = vlaneseq
    %v1024 = vshrl.u32 %v1023, 7
    %v1025 = vsub.s32 4, %v1024
    %v1026 = vrot.slane %v1010, %v1025
    %v1027 = vlaneseq
    %v1028 = vshrl.u32 %v1027, 7
    %v1029 = vsub.s32 0, %v1028
    %v1030 = vrot.slane %v1011, %v1029
    %v1034 = vlaneseq
    %v1035 = vshrl.u32 %v1034, 7
    %v1036 = vsub.s32 0, %v1035
    %v1037 = vrot.slane %v1022, %v1036
    %v1038 = vlaneseq
    %v1039 = vshrl.u32 %v1038, 7
    %v1040 = vsub.s32 0, %v1039
    %v1041 = vrot.slane %v1026, %v1040
    %v1042 = vlaneseq
    %v1043 = vshrl.u32 %v1042, 7
    %v1044 = vsub.s32 0, %v1043
    %v1045 = vrot.slane %v1030, %v1044
    %v1046 = vmul.f32 %v1015, %v1037
    %v1047 = vmul.f32 %v1015, %v1041
    %v1048 = vmul.f32 %v1015, %v1045
    %v1049 = vadd.f32 %v923, %v1046
    %v1050 = vadd.f32 %v925, %v1047
    %v1051 = vadd.f32 %v1004, %v1048
    %1052 = vset.pattern.permute.xlu0 1
    %1053 = vperm.xlu0 %1052, %v1009
    %v1054 = vpop.permute.xlu0 %1053
    %v1056 = vlaneseq
    %v1057 = vshrl.u32 %v1056, 7
    %v1058 = vsub.s32 1, %v1057
    %v1059 = vrot.slane %v1010, %v1058
    %v1060 = vlaneseq
    %v1061 = vshrl.u32 %v1060, 7
    %v1062 = vsub.s32 5, %v1061
    %v1063 = vrot.slane %v1010, %v1062
    %v1064 = vlaneseq
    %v1065 = vshrl.u32 %v1064, 7
    %v1066 = vsub.s32 1, %v1065
    %v1067 = vrot.slane %v1011, %v1066
    %v1071 = vlaneseq
    %v1072 = vshrl.u32 %v1071, 7
    %v1073 = vsub.s32 1, %v1072
    %v1074 = vrot.slane %v1059, %v1073
    %v1075 = vlaneseq
    %v1076 = vshrl.u32 %v1075, 7
    %v1077 = vsub.s32 1, %v1076
    %v1078 = vrot.slane %v1063, %v1077
    %v1079 = vlaneseq
    %v1080 = vshrl.u32 %v1079, 7
    %v1081 = vsub.s32 1, %v1080
    %v1082 = vrot.slane %v1067, %v1081
    %v1083 = vmul.f32 %v1054, %v1074
    %v1084 = vmul.f32 %v1054, %v1078
    %v1085 = vmul.f32 %v1054, %v1082
    %v1086 = vadd.f32 %v1049, %v1083
    %v1087 = vadd.f32 %v1050, %v1084
    %v1088 = vadd.f32 %v1051, %v1085
    %1089 = vset.pattern.permute.xlu0 2
    %1090 = vperm.xlu0 %1089, %v1009
    %v1091 = vpop.permute.xlu0 %1090
    %v1093 = vlaneseq
    %v1094 = vshrl.u32 %v1093, 7
    %v1095 = vsub.s32 2, %v1094
    %v1096 = vrot.slane %v1010, %v1095
    %v1097 = vlaneseq
    %v1098 = vshrl.u32 %v1097, 7
    %v1099 = vsub.s32 6, %v1098
    %v1100 = vrot.slane %v1010, %v1099
    %v1101 = vlaneseq
    %v1102 = vshrl.u32 %v1101, 7
    %v1103 = vsub.s32 2, %v1102
    %v1104 = vrot.slane %v1011, %v1103
    %v1108 = vlaneseq
    %v1109 = vshrl.u32 %v1108, 7
    %v1110 = vsub.s32 2, %v1109
    %v1111 = vrot.slane %v1096, %v1110
    %v1112 = vlaneseq
    %v1113 = vshrl.u32 %v1112, 7
    %v1114 = vsub.s32 2, %v1113
    %v1115 = vrot.slane %v1100, %v1114
    %v1116 = vlaneseq
    %v1117 = vshrl.u32 %v1116, 7
    %v1118 = vsub.s32 2, %v1117
    %v1119 = vrot.slane %v1104, %v1118
    %v1120 = vmul.f32 %v1091, %v1111
    %v1121 = vmul.f32 %v1091, %v1115
    %v1122 = vmul.f32 %v1091, %v1119
    %v1123 = vadd.f32 %v1086, %v1120
    %v1124 = vadd.f32 %v1087, %v1121
    %v1125 = vadd.f32 %v1088, %v1122
    %1126 = vset.pattern.permute.xlu0 3
    %1127 = vperm.xlu0 %1126, %v1009
    %v1128 = vpop.permute.xlu0 %1127
    %v1130 = vlaneseq
    %v1131 = vshrl.u32 %v1130, 7
    %v1132 = vsub.s32 3, %v1131
    %v1133 = vrot.slane %v1010, %v1132
    %v1134 = vlaneseq
    %v1135 = vshrl.u32 %v1134, 7
    %v1136 = vsub.s32 7, %v1135
    %v1137 = vrot.slane %v1010, %v1136
    %v1138 = vlaneseq
    %v1139 = vshrl.u32 %v1138, 7
    %v1140 = vsub.s32 3, %v1139
    %v1141 = vrot.slane %v1011, %v1140
    %v1145 = vlaneseq
    %v1146 = vshrl.u32 %v1145, 7
    %v1147 = vsub.s32 3, %v1146
    %v1148 = vrot.slane %v1133, %v1147
    %v1149 = vlaneseq
    %v1150 = vshrl.u32 %v1149, 7
    %v1151 = vsub.s32 3, %v1150
    %v1152 = vrot.slane %v1137, %v1151
    %v1153 = vlaneseq
    %v1154 = vshrl.u32 %v1153, 7
    %v1155 = vsub.s32 3, %v1154
    %v1156 = vrot.slane %v1141, %v1155
    %v1157 = vmul.f32 %v1128, %v1148
    %v1158 = vmul.f32 %v1128, %v1152
    %v1159 = vmul.f32 %v1128, %v1156
    %v1160 = vadd.f32 %v1123, %v1157
    %v1161 = vadd.f32 %v1124, %v1158
    %v1162 = vadd.f32 %v1125, %v1159
    %v1163 = vmax.f32 %v1160, 0.0
    %v1164 = vmax.f32 %v1161, 0.0
    %v1165 = vmax.f32 %v1162, 0.0
    %v1166 = vpack.c.bf16 %v1163, %v1163
    %v1167 = vpack.c.bf16 %v1164, %v1164
    %v1168 = vpack.c.bf16 %v1165, %v1165
    %v1169 = vld [vmem:[%s7] sm:$0xf]
    %v1170 = vld [vmem:[%s7 + $0x4] sm:$0xf]
    %v1171 = vld [vmem:[%s7 + $0x8] sm:$0xf]
    %v1172 = vld [vmem:[%s7 + $0xc] sm:$0xf]
    %v1173 = vld [vmem:[%s7 + $0x10] sm:$0xf]
    %v1174 = vld [vmem:[%s7 + $0x14] sm:$0xf]
    %v1175 = vld [vmem:[%s7 + $0x18] sm:$0xf]
    %v1176 = vld [vmem:[%s7 + $0x1c] sm:$0xf]
    %v1177 = vld [vmem:[%s7 + $0x20] sm:$0xf]
    %v1178 = vld [vmem:[%s7 + $0x24] sm:$0xf]
    %v1179 = vld [vmem:[%s7 + $0x28] sm:$0xf]
    %v1180 = vld [vmem:[%s7 + $0x2c] sm:$0xf]
    %v1181 = vld [vmem:[%s7 + $0x30] sm:$0xf]
    %v1182 = vld [vmem:[%s7 + $0x34] sm:$0xf]
    %v1183 = vld [vmem:[%s7 + $0x38] sm:$0xf]
    %v1184 = vld [vmem:[%s7 + $0x3c] sm:$0xf]
    %v1185 = vld [vmem:[%s7 + $0x40] sm:$0xf]
    %v1186 = vld [vmem:[%s7 + $0x44] sm:$0xf]
    %v1187 = vld [vmem:[%s7 + $0x48] sm:$0xf]
    %v1188 = vld [vmem:[%s7 + $0x4c] sm:$0xf]
    %v1189 = vld [vmem:[%s7 + $0x50] sm:$0xf]
    %v1190 = vld [vmem:[%s7 + $0x54] sm:$0xf]
    %v1191 = vld [vmem:[%s7 + $0x58] sm:$0xf]
    %v1192 = vld [vmem:[%s7 + $0x5c] sm:$0xf]
    %v1193 = vld [vmem:[%s7 + $0x60] sm:$0xf]
    %v1194 = vld [vmem:[%s7 + $0x64] sm:$0xf]
    %v1195 = vld [vmem:[%s7 + $0x68] sm:$0xf]
    %v1196 = vld [vmem:[%s7 + $0x6c] sm:$0xf]
    %v1197 = vld [vmem:[%s7 + $0x70] sm:$0xf]
    %v1198 = vld [vmem:[%s7 + $0x74] sm:$0xf]
    %v1199 = vld [vmem:[%s7 + $0x78] sm:$0xf]
    %v1200 = vld [vmem:[%s7 + $0x7c] sm:$0xf]
    %v1201 = vld [vmem:[%s7 + $0x80] sm:$0xf]
    %v1202 = vld [vmem:[%s7 + $0x84] sm:$0xf]
    %v1203 = vld [vmem:[%s7 + $0x88] sm:$0xf]
    %v1204 = vld [vmem:[%s7 + $0x8c] sm:$0xf]
    %v1205 = vld [vmem:[%s7 + $0x90] sm:$0xf]
    %v1206 = vld [vmem:[%s7 + $0x94] sm:$0xf]
    %v1207 = vld [vmem:[%s7 + $0x98] sm:$0xf]
    %v1208 = vld [vmem:[%s7 + $0x9c] sm:$0xf]
    %v1209 = vld [vmem:[%s7 + $0xa0] sm:$0xf]
    %v1210 = vld [vmem:[%s7 + $0xa4] sm:$0xf]
    %v1211 = vld [vmem:[%s7 + $0xa8] sm:$0xf]
    %v1212 = vld [vmem:[%s7 + $0xac] sm:$0xf]
    %v1213 = vld [vmem:[%s7 + $0xb0] sm:$0xf]
    %v1214 = vld [vmem:[%s7 + $0xb4] sm:$0xf]
    %v1215 = vld [vmem:[%s7 + $0xb8] sm:$0xf]
    %v1216 = vld [vmem:[%s7 + $0xbc] sm:$0xf]
    %v1217 = vld [vmem:[%s8] sm:$0x1]
    %v1219 = vlaneseq
    %v1220 = vshrl.u32 %v1219, 7
    %v1221 = vsub.s32 0, %v1220
    %v1222 = vrot.slane %v1217, %v1221
    %v1272 = vunpack.c.l.b16 %v1169
    %v1273 = vunpack.c.l.b16 %v1170
    %v1274 = vunpack.c.l.b16 %v1171
    %v1275 = vunpack.c.l.b16 %v1172
    %v1276 = vunpack.c.l.b16 %v1173
    %v1277 = vunpack.c.l.b16 %v1174
    %v1278 = vunpack.c.l.b16 %v1175
    %v1279 = vunpack.c.l.b16 %v1176
    %v1280 = vunpack.c.l.b16 %v1177
    %v1281 = vunpack.c.l.b16 %v1178
    %v1282 = vunpack.c.l.b16 %v1179
    %v1283 = vunpack.c.l.b16 %v1180
    %v1284 = vunpack.c.l.b16 %v1181
    %v1285 = vunpack.c.l.b16 %v1182
    %v1286 = vunpack.c.l.b16 %v1183
    %v1287 = vunpack.c.l.b16 %v1184
    %v1288 = vunpack.c.l.b16 %v1185
    %v1289 = vunpack.c.l.b16 %v1186
    %v1290 = vunpack.c.l.b16 %v1187
    %v1291 = vunpack.c.l.b16 %v1188
    %v1292 = vunpack.c.l.b16 %v1189
    %v1293 = vunpack.c.l.b16 %v1190
    %v1294 = vunpack.c.l.b16 %v1191
    %v1295 = vunpack.c.l.b16 %v1192
    %v1296 = vunpack.c.l.b16 %v1193
    %v1297 = vunpack.c.l.b16 %v1194
    %v1298 = vunpack.c.l.b16 %v1195
    %v1299 = vunpack.c.l.b16 %v1196
    %v1300 = vunpack.c.l.b16 %v1197
    %v1301 = vunpack.c.l.b16 %v1198
    %v1302 = vunpack.c.l.b16 %v1199
    %v1303 = vunpack.c.l.b16 %v1200
    %v1304 = vunpack.c.l.b16 %v1201
    %v1305 = vunpack.c.l.b16 %v1202
    %v1306 = vunpack.c.l.b16 %v1203
    %v1307 = vunpack.c.l.b16 %v1204
    %v1308 = vunpack.c.l.b16 %v1205
    %v1309 = vunpack.c.l.b16 %v1206
    %v1310 = vunpack.c.l.b16 %v1207
    %v1311 = vunpack.c.l.b16 %v1208
    %v1312 = vunpack.c.l.b16 %v1209
    %v1313 = vunpack.c.l.b16 %v1210
    %v1314 = vunpack.c.l.b16 %v1211
    %v1315 = vunpack.c.l.b16 %v1212
    %v1316 = vunpack.c.l.b16 %v1213
    %v1317 = vunpack.c.l.b16 %v1214
    %v1318 = vunpack.c.l.b16 %v1215
    %v1319 = vunpack.c.l.b16 %v1216
    %v1320 = vpack.c.b16 %v1273, %v1272
    %v1321 = vpack.c.b16 %v1275, %v1274
    %v1322 = vpack.c.b16 %v1277, %v1276
    %v1323 = vpack.c.b16 %v1279, %v1278
    %v1324 = vpack.c.b16 %v1281, %v1280
    %v1325 = vpack.c.b16 %v1283, %v1282
    %v1326 = vpack.c.b16 %v1285, %v1284
    %v1327 = vpack.c.b16 %v1287, %v1286
    %v1328 = vpack.c.b16 %v1289, %v1288
    %v1329 = vpack.c.b16 %v1291, %v1290
    %v1330 = vpack.c.b16 %v1293, %v1292
    %v1331 = vpack.c.b16 %v1295, %v1294
    %v1332 = vpack.c.b16 %v1297, %v1296
    %v1333 = vpack.c.b16 %v1299, %v1298
    %v1334 = vpack.c.b16 %v1301, %v1300
    %v1335 = vpack.c.b16 %v1303, %v1302
    %v1336 = vpack.c.b16 %v1305, %v1304
    %v1337 = vpack.c.b16 %v1307, %v1306
    %v1338 = vpack.c.b16 %v1309, %v1308
    %v1339 = vpack.c.b16 %v1311, %v1310
    %v1340 = vpack.c.b16 %v1313, %v1312
    %v1341 = vpack.c.b16 %v1315, %v1314
    %v1342 = vpack.c.b16 %v1317, %v1316
    %v1343 = vpack.c.b16 %v1319, %v1318
    %1368 = vmatprep.subr.bf16.mxu0 0
    %1369 = vmatpush1.bf16.msra.mxu0 %v1327
    %1370 = vmatprep.subr.bf16.mxu0 0
    %1371 = vmatpush1.bf16.msra.mxu0 %v1326
    %1372 = vmatprep.subr.bf16.mxu0 0
    %1373 = vmatpush1.bf16.msra.mxu0 %v1325
    %1374 = vmatprep.subr.bf16.mxu0 0
    %1375 = vmatpush1.bf16.msra.mxu0 %v1324
    %1376 = vmatprep.subr.bf16.mxu0 0
    %1377 = vmatpush1.bf16.msra.mxu0 %v1323
    %1378 = vmatprep.subr.bf16.mxu0 0
    %1379 = vmatpush1.bf16.msra.mxu0 %v1322
    %1380 = vmatprep.subr.bf16.mxu0 0
    %1381 = vmatpush1.bf16.msra.mxu0 %v1321
    %1382 = vmatprep.subr.bf16.mxu0 0
    %1383 = vmatpush1.bf16.msra.mxu0 %v1320
    %1384 = vmatprep.subr.bf16.mxu0 0
    %1385 = vmatpush2.bf16.msra.mxu0 %v1335
    %1386 = vmatprep.subr.bf16.mxu0 0
    %1387 = vmatpush2.bf16.msra.mxu0 %v1334
    %1388 = vmatprep.subr.bf16.mxu0 0
    %1389 = vmatpush2.bf16.msra.mxu0 %v1333
    %1390 = vmatprep.subr.bf16.mxu0 0
    %1391 = vmatpush2.bf16.msra.mxu0 %v1332
    %1392 = vmatprep.subr.bf16.mxu0 0
    %1393 = vmatpush2.bf16.msra.mxu0 %v1331
    %1394 = vmatprep.subr.bf16.mxu0 0
    %1395 = vmatpush2.bf16.msra.mxu0 %v1330
    %1396 = vmatprep.subr.bf16.mxu0 0
    %1397 = vmatpush2.bf16.msra.mxu0 %v1329
    %1398 = vmatprep.subr.bf16.mxu0 0
    %1399 = vmatpush2.bf16.msra.mxu0 %v1328
    %1400 = vmatprep.mubr.bf16.mxu0 %v1167
    %1401 = vmatmul.mubr.bf16.gmra.mxu0 %v1166
    %v1402 = vpop.f32.mrf.mxu0
    %v1403 = vadd.f32 %v1222, %v1402
    %v1404 = vpop.f32.mrf.mxu0
    %v1405 = vpop.f32.mrf.mxu0
    %v1406 = vpop.f32.mrf.mxu0
    %1407 = vdwg.mxu0
    %1408 = vmatprep.subr.bf16.mxu0 0
    %1409 = vmatpush1.bf16.msra.mxu0 %v1343
    %1410 = vmatprep.subr.bf16.mxu0 0
    %1411 = vmatpush1.bf16.msra.mxu0 %v1342
    %1412 = vmatprep.subr.bf16.mxu0 0
    %1413 = vmatpush1.bf16.msra.mxu0 %v1341
    %1414 = vmatprep.subr.bf16.mxu0 0
    %1415 = vmatpush1.bf16.msra.mxu0 %v1340
    %1416 = vmatprep.subr.bf16.mxu0 0
    %1417 = vmatpush1.bf16.msra.mxu0 %v1339
    %1418 = vmatprep.subr.bf16.mxu0 0
    %1419 = vmatpush1.bf16.msra.mxu0 %v1338
    %1420 = vmatprep.subr.bf16.mxu0 0
    %1421 = vmatpush1.bf16.msra.mxu0 %v1337
    %1422 = vmatprep.subr.bf16.mxu0 0
    %1423 = vmatpush1.bf16.msra.mxu0 %v1336
    %1424 = vmatprep.subr.bf16.mxu0 0
    %1425 = vmatpush2.bf16.msra.mxu0 0
    %1426 = vmatprep.subr.bf16.mxu0 0
    %1427 = vmatpush2.bf16.msra.mxu0 0
    %1428 = vmatprep.subr.bf16.mxu0 0
    %1429 = vmatpush2.bf16.msra.mxu0 0
    %1430 = vmatprep.subr.bf16.mxu0 0
    %1431 = vmatpush2.bf16.msra.mxu0 0
    %1432 = vmatprep.subr.bf16.mxu0 0
    %1433 = vmatpush2.bf16.msra.mxu0 0
    %1434 = vmatprep.subr.bf16.mxu0 0
    %1435 = vmatpush2.bf16.msra.mxu0 0
    %1436 = vmatprep.subr.bf16.mxu0 0
    %1437 = vmatpush2.bf16.msra.mxu0 0
    %1438 = vmatprep.subr.bf16.mxu0 0
    %1439 = vmatpush2.bf16.msra.mxu0 0
    %1440 = vmatprep.mubr.bf16.mxu0 0
    %1441 = vmatmul.mubr.bf16.gmra.mxu0 %v1168
    %v1442 = vpop.f32.mrf.mxu0
    %v1443 = vadd.f32 %v1403, %v1442
    %v1444 = vpop.f32.mrf.mxu0
    %v1445 = vpop.f32.mrf.mxu0
    %v1446 = vpop.f32.mrf.mxu0
    %1447 = vdwg.mxu0
    %v1448 = vxor.u32 %v1443, 2147483648
    %v1449 = vmul.f32 %v1448, 1.442695
    %v1450 = vpow.pop %v1449
    %v1451 = vadd.f32 %v1450, 1.0
    %v1452 = vrcp.pop %v1451
    %v1453 = vmul.f32 1.0, %v1452
    %vm1454 = vcmask 64512
    %1455 = vst.msk [vmem:[#allocation5] sm:$0xff] %vm1454, %v1453
    // Predicated region
    $region42: #{tpu_custom_call.1} parent=1 // pred_check
      _
    $region43: #{tpu_custom_call.1} parent=1 // pred_check_branch
      %1457 = sbr.rel (0) target = $region45
    $region44: #{tpu_custom_call.1} parent=1 // pred_region
      %s1459 = ssub.s32 128, 128
      %1460 = vsyncadd [#allocation4], %s1459
      %s1462 = sshll.u32 [#allocation5], 4
      %s1463 = int_to_ptr.vmem [resolvable:$true] %s1462
      %1465 = dma.vmem_to_hbm [thread:$0]  %s1463, 128, %s9, [#allocation4]
    $region45: #{tpu_custom_call.1} parent=1 // pred_fallthru
      _
    // Predicated region
    $region46: #{tpu_custom_call.1} parent=1 // pred_check
      _
    $region47: #{tpu_custom_call.1} parent=1 // pred_check_branch
      %1467 = sbr.rel (0) target = $region49
    $region48: #{tpu_custom_call.1} parent=1 // pred_region
      %1468 = dma.done [#allocation4], 128
    $region49: #{tpu_custom_call.1} parent=1 // pred_fallthru
      _
    %1469 = vsyncpa [#allocation3], 1
    %1470 = vsyncpa [#allocation4], 1

</llo_original>
